<compile_context>
chip_gen: v7x
topology: tpu7x:2x2x1
jax: 0.10.0
libtpu: 0.0.40
codegen_flags: <defaults>
</compile_context>

<pallas_src>
import functools

import numpy as np
import jax
import jax.numpy as jnp
from jax import lax
from jax.experimental import pallas as pl
from jax.experimental.pallas import tpu as pltpu


# --------------------------------------------------------------------------------------
# Kernel 1: tiled dense projection  y = x @ W   (bf16 operands, f32 accumulation)
# --------------------------------------------------------------------------------------
def _linear_kernel(x_ref, w_ref, o_ref):
    o_ref[...] = jnp.dot(x_ref[...], w_ref[...],
                         preferred_element_type=jnp.float32).astype(o_ref.dtype)


def linear_pallas(x2d, w, out_dtype=jnp.float32, tm=512):
    n, din = x2d.shape
    dout = w.shape[1]
    tm = min(tm, n)
    return pl.pallas_call(
        _linear_kernel,
        out_shape=jax.ShapeDtypeStruct((n, dout), out_dtype),
        grid=(pl.cdiv(n, tm),),
        in_specs=[pl.BlockSpec((tm, din), lambda i: (i, 0)),
                  pl.BlockSpec((din, dout), lambda i: (0, 0))],   # weight stays VMEM-resident
        out_specs=pl.BlockSpec((tm, dout), lambda i: (i, 0)),
        compiler_params=pltpu.CompilerParams(dimension_semantics=("parallel",)),
    )(x2d, w)


# --------------------------------------------------------------------------------------
# Kernel 2: time/channel raw scores — one wide matmul per (batch, kv-head) GQA group.
#           q: (G*T, hd)  against  concat([time_key, chan_key]): (P+C, hd).
#           attn_bias handled as the precomputed additive correction  b @ K^T.
# --------------------------------------------------------------------------------------
def _tc_scores_kernel(q_ref, kb_ref, corr_ref, o_ref):
    s = lax.dot_general(q_ref[0, 0], kb_ref[0, 0], (((1,), (1,)), ((), ())),
                        preferred_element_type=jnp.float32)          # (G*T, P+C)
    o_ref[0, 0] = s + corr_ref[0, 0]                                  # broadcast (1, P+C)


# --------------------------------------------------------------------------------------
# Kernel 3: fused attention per (batch, query-tile):
#           global QK^T + window mask + combine with shifted time/chan scores
#           + scale + causal mask + softmax + P @ V, all GQA groups/heads in-kernel,
#           written as a lane-dense (tq, D) merged-head slab.
# --------------------------------------------------------------------------------------
def _fused_attn_kernel(tc_ref, q_ref, k_ref, v_ref, gcorr_ref, sel_ref, win_ref,
                       caus_ref, o_ref, *, n_kv, groups, tq, head_dim, inv_scale):
    sel = sel_ref[...]                       # (P+C, T) f32 0/1 expansion selector (resident)
    win = win_ref[...]                       # (tq, T)  f32 0/1 global-attention window
    caus = caus_ref[...] > 0.0               # (tq, T)  causal mask
    neg = np.float32(np.finfo(np.float32).min)

    q_all = q_ref[0, 0]                      # (H*tq, hd)  bf16, rows ordered (head, t)
    tc_all = tc_ref[0, 0]                    # (H*tq, P+C) f32 rel-shifted time/chan scores

    for kv in range(n_kv):                   # static unroll over kv heads (GQA groups)
        k = k_ref[0, kv]                     # (T, hd) shared key of this group (bf16)
        v = v_ref[0, kv]                     # (T, hd) shared value (bf16)
        corr_g = gcorr_ref[0, kv]            # (1, T)  f32:  b_global @ k^T

        # wide QK^T for the whole group (M = groups*tq rows) — f32 accumulation
        q_grp = q_all[kv * groups * tq:(kv + 1) * groups * tq]        # (G*tq, hd)
        g_sc = lax.dot_general(q_grp, k, (((1,), (1,)), ((), ())),
                               preferred_element_type=jnp.float32)    # (G*tq, T)

        for g in range(groups):              # static unroll over heads of the group
            h = kv * groups + g
            # expand shifted time/chan scores to (tq, T) via exact 0/1 selector (f32)
            aw = jnp.dot(tc_all[h * tq:(h + 1) * tq], sel,
                         preferred_element_type=jnp.float32)
            # windowed global attention: masked_fill(~window, 0) == multiply by {0,1}
            aw = aw + (g_sc[g * tq:(g + 1) * tq] + corr_g) * win
            aw = aw * inv_scale              # 1 / (sqrt(hd) * (layer_idx + 1))
            aw = jnp.where(caus, aw, neg)
            aw = aw - jnp.max(aw, axis=-1, keepdims=True)
            ew = jnp.exp(aw)
            probs = ew * pl.reciprocal(jnp.sum(ew, axis=-1, keepdims=True), approx=True)
            # TODO(synk): attn_dropout omitted (eval mode / p = 0).
            pv = jnp.dot(probs.astype(v.dtype), v,
                         preferred_element_type=jnp.float32)          # (tq, hd)
            o_ref[0, :, h * head_dim:(h + 1) * head_dim] = pv.astype(o_ref.dtype)


# --------------------------------------------------------------------------------------
# Relative-shift glue (pure data movement, matches the torch `.view` trick exactly)
# --------------------------------------------------------------------------------------
def _rel_shift(x):
    b, h, q, k = x.shape
    x_r = x.reshape(b, h, k, q)                                     # flat reinterpretation
    x_p = jnp.concatenate([jnp.zeros((b, h, k, 1), x.dtype), x_r], axis=-1)
    x_p = x_p.reshape(b, h, q + 1, k)
    return x_p[:, :, 1:, :]


def _rel_shift_chan(x, chan_len):
    b, h, t, c = x.shape
    i = np.arange(chan_len)[:, None]
    j = np.arange(chan_len)[None, :]
    base = (chan_len - 1 - np.abs(i - j)).astype(np.int32)          # (C, C)
    idx = np.tile(base, (t // chan_len, 1))                         # (T, C)
    idx = jnp.broadcast_to(jnp.asarray(idx)[None, None], x.shape)
    return jnp.take_along_axis(x, idx, axis=-1)


# --------------------------------------------------------------------------------------
# Host-side constants / layout helpers
# --------------------------------------------------------------------------------------
def _attn_constants(P, C):
    T = P * C
    jj = np.arange(T)
    sel = np.zeros((P + C, T), np.float32)       # time part: row j//C ; chan part: row P+j%C
    sel[jj // C, jj] = 1.0
    sel[P + (jj % C), jj] = 1.0
    rp = jj[:, None] // C
    cp = jj[None, :] // C
    win = (np.abs(rp - cp) <= 10)
    win[-C:, :] = True                            # last channel-block rows see everything
    caus = (cp <= rp)
    return (jnp.asarray(sel), jnp.asarray(win.astype(np.float32)),
            jnp.asarray(caus.astype(np.float32)))


def _pick_qtile(T):
    for t in (256, 128, 64, 32, 16, 8):
        if t <= T and T % t == 0:
            return t
    return T


def _tile_query(x, nqt, tq):
    # (B, H, T, L) -> (B, nqt, H*tq, L), rows ordered (head, t-within-tile)
    B, H, T, L = x.shape
    x = x.reshape(B, H, nqt, tq, L).transpose(0, 2, 1, 3, 4)
    return x.reshape(B, nqt, H * tq, L)


# --------------------------------------------------------------------------------------
# Full forward (config: global_att=True, scale_attn_weights=True,
#               scale_attn_by_inverse_layer_idx=True, no cross-attn / cache / lora)
# --------------------------------------------------------------------------------------
def mvpformer_gqa_attention(hidden_states, positional_embedding, channel_embedding,
                            params, *, num_heads, num_kv_heads, layer_idx):
    B, P, C, D = hidden_states.shape
    H, Hkv = num_heads, num_kv_heads
    G = H // Hkv
    hd = D // H
    Dkv = hd * Hkv
    T = P * C
    bf16 = jnp.bfloat16

    # ---- projections: fused q_attn+c_attn weight, tiled Pallas matmuls (bf16/f32-acc) ----
    w_qc = jnp.concatenate([params["w_q"], params["w_c"]], axis=1).astype(bf16)
    qkv = linear_pallas(hidden_states.reshape(B * P * C, D).astype(bf16), w_qc,
                        out_dtype=bf16)                                   # (N, D + 2*Dkv)
    query = qkv[:, :D].reshape(B, P, C, D)
    key = qkv[:, D:D + Dkv].reshape(B, P, C, Dkv)
    value = qkv[:, D + Dkv:].reshape(B, P, C, Dkv)
    time_key = linear_pallas(positional_embedding.reshape(B * P, D).astype(bf16),
                             params["w_pos"].astype(bf16), out_dtype=bf16).reshape(B, P, Dkv)
    chan_key = linear_pallas(channel_embedding.reshape(B * C, D).astype(bf16),
                             params["w_chan"].astype(bf16), out_dtype=bf16).reshape(B, C, Dkv)

    # ---- head split (layout glue only) ----
    q_h = query.reshape(B, P, C, H, hd).transpose(0, 3, 1, 2, 4).reshape(B, H, T, hd)
    k_h = key.reshape(B, P, C, Hkv, hd).transpose(0, 3, 1, 2, 4).reshape(B, Hkv, T, hd)
    v_h = value.reshape(B, P, C, Hkv, hd).transpose(0, 3, 1, 2, 4).reshape(B, Hkv, T, hd)
    tk_h = time_key.reshape(B, P, Hkv, hd).transpose(0, 2, 1, 3)          # (B, Hkv, P, hd)
    ck_h = chan_key.reshape(B, C, Hkv, hd).transpose(0, 2, 1, 3)          # (B, Hkv, C, hd)

    # attn_bias split per kv-head: order [global, time, channel]
    ab = params["attn_bias"].reshape(3, Hkv, hd).astype(jnp.float32)
    # (q + b) @ K^T = q @ K^T + b @ K^T  ->  tiny f32 corrections, computed once per kv-head
    corr_t = jnp.einsum("kd,bkpd->bkp", ab[1], tk_h.astype(jnp.float32))
    corr_c = jnp.einsum("kd,bkcd->bkc", ab[2], ck_h.astype(jnp.float32))
    tc_corr = jnp.concatenate([corr_t, corr_c], axis=-1)[:, :, None, :]   # (B, Hkv, 1, P+C)
    g_corr = jnp.einsum("kd,bktd->bkt", ab[0],
                        k_h.astype(jnp.float32))[:, :, None, :]           # (B, Hkv, 1, T)

    # ---- kernel 2: time/channel raw scores, one wide matmul per (batch, kv-head) ----
    q_grp = q_h.reshape(B, Hkv, G * T, hd)
    kb = jnp.concatenate([tk_h, ck_h], axis=2)                            # (B, Hkv, P+C, hd)
    tc_raw = pl.pallas_call(
        _tc_scores_kernel,
        out_shape=jax.ShapeDtypeStruct((B, Hkv, G * T, P + C), jnp.float32),
        grid=(B, Hkv),
        in_specs=[
            pl.BlockSpec((1, 1, G * T, hd), lambda b, k: (b, k, 0, 0)),
            pl.BlockSpec((1, 1, P + C, hd), lambda b, k: (b, k, 0, 0)),
            pl.BlockSpec((1, 1, 1, P + C), lambda b, k: (b, k, 0, 0)),
        ],
        out_specs=pl.BlockSpec((1, 1, G * T, P + C), lambda b, k: (b, k, 0, 0)),
        compiler_params=pltpu.CompilerParams(
            dimension_semantics=("parallel", "parallel")),
    )(q_grp, kb, tc_corr)

    # ---- relative shifts (pure data movement on the small (T, P+C) tensors) ----
    tc_raw = tc_raw.reshape(B, H, T, P + C)
    time_sh = _rel_shift(tc_raw[..., :P])                                 # (B, H, T, P)
    chan_sh = _rel_shift_chan(tc_raw[..., P:], C)                         # (B, H, T, C)
    tc_sh = jnp.concatenate([time_sh, chan_sh], axis=-1)                  # (B, H, T, P+C)

    # ---- kernel 3: fused global QK^T + combine + masks + softmax + PV ----
    tq = _pick_qtile(T)
    nqt = T // tq
    q_tiled = _tile_query(q_h, nqt, tq)                                   # (B, nqt, H*tq, hd)
    tc_tiled = _tile_query(tc_sh, nqt, tq)                                # (B, nqt, H*tq, P+C)
    sel, win01, caus01 = _attn_constants(P, C)
    inv_scale = 1.0 / (float(hd) ** 0.5 * float(layer_idx + 1))

    fused = functools.partial(_fused_attn_kernel, n_kv=Hkv, groups=G, tq=tq,
                              head_dim=hd, inv_scale=inv_scale)
    attn_slab = pl.pallas_call(
        fused,
        out_shape=jax.ShapeDtypeStruct((B, T, D), bf16),                  # merged-head slab
        grid=(B, nqt),
        in_specs=[
            pl.BlockSpec((1, 1, H * tq, P + C), lambda b, q: (b, q, 0, 0)),
            pl.BlockSpec((1, 1, H * tq, hd), lambda b, q: (b, q, 0, 0)),
            pl.BlockSpec((1, Hkv, T, hd), lambda b, q: (b, 0, 0, 0)),
            pl.BlockSpec((1, Hkv, T, hd), lambda b, q: (b, 0, 0, 0)),
            pl.BlockSpec((1, Hkv, 1, T), lambda b, q: (b, 0, 0, 0)),
            pl.BlockSpec((P + C, T), lambda b, q: (0, 0)),
            pl.BlockSpec((tq, T), lambda b, q: (q, 0)),
            pl.BlockSpec((tq, T), lambda b, q: (q, 0)),
        ],
        out_specs=pl.BlockSpec((1, tq, D), lambda b, q: (b, q, 0)),       # lane-dense slab
        compiler_params=pltpu.CompilerParams(
            dimension_semantics=("parallel", "arbitrary"),
            vmem_limit_bytes=32 * 1024 * 1024),
    )(tc_tiled, q_tiled, k_h, v_h, g_corr, sel, win01, caus01)

    # slab rows are already (p, c)-ordered with heads merged along D -> straight to c_proj.
    out = linear_pallas(attn_slab.reshape(B * T, D),
                        params["w_proj"].astype(bf16), out_dtype=jnp.float32)
    # TODO(synk): resid_dropout omitted (eval mode / p = 0); `present` / attentions not returned.
    return out.reshape(B, P, C, D)


# --------------------------------------------------------------------------------------
# Pure-JAX float32 reference (mirrors the torch forward) for a sanity check
# --------------------------------------------------------------------------------------
def reference_forward(hidden_states, positional_embedding, channel_embedding,
                      params, *, num_heads, num_kv_heads, layer_idx):
    B, P, C, D = hidden_states.shape
    H, Hkv = num_heads, num_kv_heads
    groups = H // Hkv
    hd = D // H
    Dkv = hd * Hkv
    T = P * C

    query = hidden_states @ params["w_q"]
    kv = hidden_states @ params["w_c"]
    key, value = kv[..., :Dkv], kv[..., Dkv:]
    time_key = positional_embedding @ params["w_pos"]
    chan_key = channel_embedding @ params["w_chan"]

    q_h = query.reshape(B, P, C, H, hd).transpose(0, 3, 1, 2, 4).reshape(B, H, T, hd)
    k_h = jnp.repeat(key.reshape(B, P, C, Hkv, hd).transpose(0, 3, 1, 2, 4),
                     groups, axis=1).reshape(B, H, T, hd)
    v_h = jnp.repeat(value.reshape(B, P, C, Hkv, hd).transpose(0, 3, 1, 2, 4),
                     groups, axis=1).reshape(B, H, T, hd)
    tk_h = jnp.repeat(time_key.reshape(B, P, Hkv, hd).transpose(0, 2, 1, 3), groups, axis=1)
    ck_h = jnp.repeat(chan_key.reshape(B, C, Hkv, hd).transpose(0, 2, 1, 3), groups, axis=1)

    ab = jnp.repeat(params["attn_bias"].reshape(3, Hkv, hd), groups, axis=1)  # (3, H, hd)
    gq = q_h + ab[0][None, :, None, :]
    tq = q_h + ab[1][None, :, None, :]
    cq = q_h + ab[2][None, :, None, :]

    glob = jnp.einsum("bhtd,bhsd->bhts", gq, k_h)
    tatt = _rel_shift(jnp.einsum("bhtd,bhpd->bhtp", tq, tk_h))
    catt = _rel_shift_chan(jnp.einsum("bhtd,bhcd->bhtc", cq, ck_h), C)

    aw = jnp.repeat(tatt, C, axis=-1) + jnp.tile(catt, (1, 1, 1, P))

    rp = np.arange(T)[:, None] // C
    cp = np.arange(T)[None, :] // C
    window = np.logical_and(cp <= rp + 10, cp >= rp - 10)
    window[-C:] = True
    aw = aw + jnp.where(jnp.asarray(window), glob, 0.0)
    aw = aw / (hd ** 0.5)
    aw = aw / float(layer_idx + 1)
    aw = jnp.where(jnp.asarray(cp <= rp), aw, jnp.finfo(jnp.float32).min)
    probs = jax.nn.softmax(aw, axis=-1)
    out = jnp.einsum("bhts,bhsd->bhtd", probs, v_h)
    merged = out.reshape(B, H, P, C, hd).transpose(0, 2, 3, 1, 4).reshape(B, P, C, D)
    return merged @ params["w_proj"]


# --------------------------------------------------------------------------------------
if __name__ == "__main__":
    # config: hidden_size=32, num_attention_heads=4, n_head_kv=2, global_att=True,
    #         scale_attn_weights=True, scale_attn_by_inverse_layer_idx=True, layer_idx=1
    B, P, C = 2, 16, 4
    D, H, Hkv = 32, 4, 2
    hd = D // H
    Dkv = hd * Hkv
    LAYER_IDX = 1

    root = jax.random.PRNGKey(0)
    ks = jax.random.split(root, 9)
    params = {
        "w_q":      0.02 * jax.random.normal(ks[0], (D, D), jnp.float32),
        "w_c":      0.02 * jax.random.normal(ks[1], (D, 2 * Dkv), jnp.float32),
        "w_pos":    0.02 * jax.random.normal(ks[2], (D, Dkv), jnp.float32),
        "w_chan":   0.02 * jax.random.normal(ks[3], (D, Dkv), jnp.float32),
        "w_proj":   0.02 * jax.random.normal(ks[4], (D, D), jnp.float32),
        "attn_bias": 0.02 * jax.random.normal(ks[5], (3 * Dkv,), jnp.float32),
    }
    hidden = jax.random.normal(ks[6], (B, P, C, D), jnp.float32)
    pos_emb = jax.random.normal(ks[7], (B, P, D), jnp.float32)
    chan_emb = jax.random.normal(ks[8], (B, C, D), jnp.float32)

    out = mvpformer_gqa_attention(hidden, pos_emb, chan_emb, params,
                                  num_heads=H, num_kv_heads=Hkv, layer_idx=LAYER_IDX)
    out = jax.block_until_ready(out)

    # full-fp32 reference (scoped precision override instead of mutating global config)
    with jax.default_matmul_precision("float32"):
        ref = jax.block_until_ready(
            reference_forward(hidden, pos_emb, chan_emb, params,
                              num_heads=H, num_kv_heads=Hkv, layer_idx=LAYER_IDX))

    assert out.shape == (B, P, C, D)
    max_err = float(jnp.max(jnp.abs(out - ref)))
    # bf16 matmul operands / approx reciprocal => looser tolerance than a pure-fp32 path.
    assert max_err < 5e-3, f"mismatch vs reference: max abs err = {max_err}"
    print("KERNEL_OK")
</pallas_src>

<mosaic_0001>
module attributes {stable_mosaic.version = 11 : i64} {
  func.func @_linear_kernel(%arg0: i32, %arg1: memref<128x32xbf16, #tpu.memory_space<vmem>>, %arg2: memref<32x64xbf16, #tpu.memory_space<vmem>>, %arg3: memref<128x64xbf16, #tpu.memory_space<vmem>>) attributes {dimension_semantics = [#tpu.dimension_semantics<parallel>], iteration_bounds = array<i64: 1>, scalar_prefetch = 0 : i64, scratch_operands = 0 : i64, tpu.core_type = #tpu.core_type<tc>, window_params = [{transform_indices = @transform_0, window_bounds = array<i64: 128, 32>}, {pipeline_mode = #tpu.pipeline_mode<synchronous>, transform_indices = @transform_1, window_bounds = array<i64: 32, 64>}, {transform_indices = @transform_2, window_bounds = array<i64: 128, 64>}]} {
    %c0 = arith.constant 0 : index
    %c0_0 = arith.constant 0 : index
    %0 = vector.load %arg1[%c0, %c0_0] : memref<128x32xbf16, #tpu.memory_space<vmem>>, vector<128x32xbf16>
    %c0_1 = arith.constant 0 : index
    %c0_2 = arith.constant 0 : index
    %1 = vector.load %arg2[%c0_1, %c0_2] : memref<32x64xbf16, #tpu.memory_space<vmem>>, vector<32x64xbf16>
    %cst = arith.constant dense<0.000000e+00> : vector<128x64xf32>
    %2 = tpu.matmul %0, %1, %cst {dimension_numbers = #tpu.dot_dimension_numbers<[1], [0], [0], [1], [0, 0, 1, 1], [], []>} : vector<128x32xbf16>, vector<32x64xbf16>, vector<128x64xf32> -> vector<128x64xf32>
    %3 = arith.truncf %2 : vector<128x64xf32> to vector<128x64xbf16>
    %c0_3 = arith.constant 0 : index
    %c0_4 = arith.constant 0 : index
    %4 = vector.load %arg3[%c0_3, %c0_4] : memref<128x64xbf16, #tpu.memory_space<vmem>>, vector<128x64xbf16>
    tpu.vector_store %arg3[%c0_3, %c0_4], %3 {strides = array<i32>} : memref<128x64xbf16, #tpu.memory_space<vmem>>, vector<128x64xbf16>,
    return
  }
  func.func @transform_0(%arg0: i32) -> (i32, i32) {
    %c0_i32 = arith.constant 0 : i32
    %c0_i32_0 = arith.constant 0 : i32
    return %arg0, %c0_i32 : i32, i32
  }
  func.func @transform_1(%arg0: i32) -> (i32, i32) {
    %c0_i32 = arith.constant 0 : i32
    %c0_i32_0 = arith.constant 0 : i32
    %c0_i32_1 = arith.constant 0 : i32
    return %c0_i32, %c0_i32_0 : i32, i32
  }
  func.func @transform_2(%arg0: i32) -> (i32, i32) {
    %c0_i32 = arith.constant 0 : i32
    %c0_i32_0 = arith.constant 0 : i32
    return %arg0, %c0_i32 : i32, i32
  }
}

</mosaic_0001>

<llo_original>
// kernel: tpu_custom_call.1
$region0: #{tpu_custom_call.1}
  #allocation0 [shape = 'u32[]', space=smem, size = 0x4, offset = 0x4, fixed_abs, tag = 'smem constant byte address 0x4 - core index']
  #allocation1 [shape = 'u32[144,128]{1,0:T(1,128)}', space=vmem, size = 0x12000, scoped, tag = 'internal scratch']
  %s0 = inlined_call_operand.vmem [shape: bf16[128,32], index: 0, kind: input, shape index: {}]
  %s1 = inlined_call_operand.vmem [shape: bf16[32,64], index: 1, kind: input, shape index: {}]
  %s2 = inlined_call_operand.vmem [shape: bf16[128,64], index: 2, kind: output, shape index: {}]
  %s3 = sld [smem:[#allocation0]]
  $region18: #{tpu_custom_call.1} parent=0
    _
  %s5 = ssub.s32 1, %s3
  %s6 = scalar_select 0, %s5, %s3
  // Predicated region
  $region2: #{tpu_custom_call.1} parent=0 // pred_check
    _
  $region3: #{tpu_custom_call.1} parent=0 // pred_check_branch
    %8 = sbr.rel (0) target = $region5
  $region4: #{tpu_custom_call.1} parent=0 // pred_region
    _
  $region5: #{tpu_custom_call.1} parent=0 // pred_fallthru
    _
  // Predicated region
  $region6: #{tpu_custom_call.1} parent=0 // pred_check
    _
  $region7: #{tpu_custom_call.1} parent=0 // pred_check_branch
    %10 = sbr.rel (0) target = $region9
  $region8: #{tpu_custom_call.1} parent=0 // pred_region
    _
  $region9: #{tpu_custom_call.1} parent=0 // pred_fallthru
    _
  %v12 = vld [vmem:[%s0] sm:$0xf]
  %v13 = vld [vmem:[%s0 + $0x4] sm:$0xf]
  %v14 = vld [vmem:[%s0 + $0x8] sm:$0xf]
  %v15 = vld [vmem:[%s0 + $0xc] sm:$0xf]
  %v16 = vld [vmem:[%s0 + $0x10] sm:$0xf]
  %v17 = vld [vmem:[%s0 + $0x14] sm:$0xf]
  %v18 = vld [vmem:[%s0 + $0x18] sm:$0xf]
  %v19 = vld [vmem:[%s0 + $0x1c] sm:$0xf]
  %v20 = vld [vmem:[%s0 + $0x20] sm:$0xf]
  %v21 = vld [vmem:[%s0 + $0x24] sm:$0xf]
  %v22 = vld [vmem:[%s0 + $0x28] sm:$0xf]
  %v23 = vld [vmem:[%s0 + $0x2c] sm:$0xf]
  %v24 = vld [vmem:[%s0 + $0x30] sm:$0xf]
  %v25 = vld [vmem:[%s0 + $0x34] sm:$0xf]
  %v26 = vld [vmem:[%s0 + $0x38] sm:$0xf]
  %v27 = vld [vmem:[%s0 + $0x3c] sm:$0xf]
  %v28 = vld [vmem:[%s1] sm:$0xf]
  %v29 = vld [vmem:[%s1 + $0x4] sm:$0xf]
  %v30 = vld [vmem:[%s1 + $0x8] sm:$0xf]
  %v31 = vld [vmem:[%s1 + $0xc] sm:$0xf]
  %v48 = vunpack.c.l.b16 %v12
  %v49 = vunpack.c.l.b16 %v13
  %v50 = vunpack.c.l.b16 %v14
  %v51 = vunpack.c.l.b16 %v15
  %v52 = vunpack.c.l.b16 %v16
  %v53 = vunpack.c.l.b16 %v17
  %v54 = vunpack.c.l.b16 %v18
  %v55 = vunpack.c.l.b16 %v19
  %v56 = vunpack.c.l.b16 %v20
  %v57 = vunpack.c.l.b16 %v21
  %v58 = vunpack.c.l.b16 %v22
  %v59 = vunpack.c.l.b16 %v23
  %v60 = vunpack.c.l.b16 %v24
  %v61 = vunpack.c.l.b16 %v25
  %v62 = vunpack.c.l.b16 %v26
  %v63 = vunpack.c.l.b16 %v27
  %v64 = vpack.c.b16 %v49, %v48
  %v65 = vpack.c.b16 %v51, %v50
  %v66 = vpack.c.b16 %v53, %v52
  %v67 = vpack.c.b16 %v55, %v54
  %v68 = vpack.c.b16 %v57, %v56
  %v69 = vpack.c.b16 %v59, %v58
  %v70 = vpack.c.b16 %v61, %v60
  %v71 = vpack.c.b16 %v63, %v62
  %v76 = vunpack.c.l.b16 %v28
  %v77 = vunpack.c.l.b16 %v29
  %v78 = vunpack.c.l.b16 %v30
  %v79 = vunpack.c.l.b16 %v31
  %v80 = vpack.c.b16 %v77, %v76
  %v81 = vpack.c.b16 %v79, %v78
  %vm84 = vcmask 261120
  %v86 = vsel %vm84, %v64, 0
  %v89 = vsel %vm84, %v65, 0
  %v92 = vsel %vm84, %v66, 0
  %v95 = vsel %vm84, %v67, 0
  %v98 = vsel %vm84, %v68, 0
  %v101 = vsel %vm84, %v69, 0
  %v104 = vsel %vm84, %v70, 0
  %v107 = vsel %vm84, %v71, 0
  %109 = vmatprep.subr.bf16.mxu0 0
  %110 = vmatpush1.bf16.msra.mxu0 %v80
  %111 = vmatprep.subr.bf16.mxu0 0
  %112 = vmatpush1.bf16.msra.mxu0 %v81
  %113 = vmatprep.subr.bf16.mxu0 0
  %114 = vmatpush1.bf16.msra.mxu0 0
  %115 = vmatprep.subr.bf16.mxu0 0
  %116 = vmatpush1.bf16.msra.mxu0 0
  %117 = vmatprep.subr.bf16.mxu0 0
  %118 = vmatpush1.bf16.msra.mxu0 0
  %119 = vmatprep.subr.bf16.mxu0 0
  %120 = vmatpush1.bf16.msra.mxu0 0
  %121 = vmatprep.subr.bf16.mxu0 0
  %122 = vmatpush1.bf16.msra.mxu0 0
  %123 = vmatprep.subr.bf16.mxu0 0
  %124 = vmatpush1.bf16.msra.mxu0 0
  %125 = vmatprep.subr.bf16.mxu0 0
  %126 = vmatpush1.bf16.msra.mxu0 0
  %127 = vmatprep.subr.bf16.mxu0 0
  %128 = vmatpush1.bf16.msra.mxu0 0
  %129 = vmatprep.subr.bf16.mxu0 0
  %130 = vmatpush1.bf16.msra.mxu0 0
  %131 = vmatprep.subr.bf16.mxu0 0
  %132 = vmatpush1.bf16.msra.mxu0 0
  %133 = vmatprep.subr.bf16.mxu0 0
  %134 = vmatpush1.bf16.msra.mxu0 0
  %135 = vmatprep.subr.bf16.mxu0 0
  %136 = vmatpush1.bf16.msra.mxu0 0
  %137 = vmatprep.subr.bf16.mxu0 0
  %138 = vmatpush1.bf16.msra.mxu0 0
  %139 = vmatprep.subr.bf16.mxu0 0
  %140 = vmatpush1.bf16.msra.mxu0 0
  %141 = vmatprep.mubr.bf16.mxu0 0
  %142 = vmatmul.mubr.bf16.gmra.mrb[0].mxu0 %v86
  %v143 = vpop.f32.mrb[0].mxu0
  %v144 = vadd.f32 0.0, %v143
  %v145 = vpop.f32.mrb[0].mxu0
  %v146 = vpop.f32.mrb[0].mxu0
  %v147 = vadd.f32 0.0, %v146
  %v148 = vpop.f32.mrb[0].mxu0
  %149 = vmatprep.mubr.bf16.mxu0 0
  %150 = vmatmul.mubr.bf16.gmra.mrb[0].mxu0 %v89
  %v151 = vpop.f32.mrb[0].mxu0
  %v152 = vadd.f32 0.0, %v151
  %v153 = vpop.f32.mrb[0].mxu0
  %v154 = vpop.f32.mrb[0].mxu0
  %v155 = vadd.f32 0.0, %v154
  %v156 = vpop.f32.mrb[0].mxu0
  %157 = vmatprep.mubr.bf16.mxu0 0
  %158 = vmatmul.mubr.bf16.gmra.mrb[0].mxu0 %v92
  %v159 = vpop.f32.mrb[0].mxu0
  %v160 = vadd.f32 0.0, %v159
  %v161 = vpop.f32.mrb[0].mxu0
  %v162 = vpop.f32.mrb[0].mxu0
  %v163 = vadd.f32 0.0, %v162
  %v164 = vpop.f32.mrb[0].mxu0
  %165 = vmatprep.mubr.bf16.mxu0 0
  %166 = vmatmul.mubr.bf16.gmra.mrb[0].mxu0 %v95
  %v167 = vpop.f32.mrb[0].mxu0
  %v168 = vadd.f32 0.0, %v167
  %v169 = vpop.f32.mrb[0].mxu0
  %v170 = vpop.f32.mrb[0].mxu0
  %v171 = vadd.f32 0.0, %v170
  %v172 = vpop.f32.mrb[0].mxu0
  %173 = vmatprep.mubr.bf16.mxu0 0
  %174 = vmatmul.mubr.bf16.gmra.mrb[0].mxu0 %v98
  %v175 = vpop.f32.mrb[0].mxu0
  %v176 = vadd.f32 0.0, %v175
  %v177 = vpop.f32.mrb[0].mxu0
  %v178 = vpop.f32.mrb[0].mxu0
  %v179 = vadd.f32 0.0, %v178
  %v180 = vpop.f32.mrb[0].mxu0
  %181 = vmatprep.mubr.bf16.mxu0 0
  %182 = vmatmul.mubr.bf16.gmra.mrb[0].mxu0 %v101
  %v183 = vpop.f32.mrb[0].mxu0
  %v184 = vadd.f32 0.0, %v183
  %v185 = vpop.f32.mrb[0].mxu0
  %v186 = vpop.f32.mrb[0].mxu0
  %v187 = vadd.f32 0.0, %v186
  %v188 = vpop.f32.mrb[0].mxu0
  %189 = vmatprep.mubr.bf16.mxu0 0
  %190 = vmatmul.mubr.bf16.gmra.mrb[0].mxu0 %v104
  %v191 = vpop.f32.mrb[0].mxu0
  %v192 = vadd.f32 0.0, %v191
  %v193 = vpop.f32.mrb[0].mxu0
  %v194 = vpop.f32.mrb[0].mxu0
  %v195 = vadd.f32 0.0, %v194
  %v196 = vpop.f32.mrb[0].mxu0
  %197 = vmatprep.mubr.bf16.mxu0 0
  %198 = vmatmul.mubr.bf16.gmra.mrb[0].mxu0 %v107
  %v199 = vpop.f32.mrb[0].mxu0
  %v200 = vadd.f32 0.0, %v199
  %v201 = vpop.f32.mrb[0].mxu0
  %v202 = vpop.f32.mrb[0].mxu0
  %v203 = vadd.f32 0.0, %v202
  %v204 = vpop.f32.mrb[0].mxu0
  %205 = vdwg.mxu0
  %v206 = vpack.c.bf16 %v147, %v144
  %v207 = vpack.c.bf16 %v155, %v152
  %v208 = vpack.c.bf16 %v163, %v160
  %v209 = vpack.c.bf16 %v171, %v168
  %v210 = vpack.c.bf16 %v179, %v176
  %v211 = vpack.c.bf16 %v187, %v184
  %v212 = vpack.c.bf16 %v195, %v192
  %v213 = vpack.c.bf16 %v203, %v200
  %v222 = vunpack.c.l.b16 %v206
  %v223 = vunpack.c.h.b16 %v206
  %v224 = vunpack.c.l.b16 %v207
  %v225 = vunpack.c.h.b16 %v207
  %v226 = vunpack.c.l.b16 %v208
  %v227 = vunpack.c.h.b16 %v208
  %v228 = vunpack.c.l.b16 %v209
  %v229 = vunpack.c.h.b16 %v209
  %v230 = vunpack.c.l.b16 %v210
  %v231 = vunpack.c.h.b16 %v210
  %v232 = vunpack.c.l.b16 %v211
  %v233 = vunpack.c.h.b16 %v211
  %v234 = vunpack.c.l.b16 %v212
  %v235 = vunpack.c.h.b16 %v212
  %v236 = vunpack.c.l.b16 %v213
  %v237 = vunpack.c.h.b16 %v213
  %v238 = vpack.c.b16 %v222, %v222
  %v239 = vpack.c.b16 %v223, %v223
  %v240 = vpack.c.b16 %v224, %v224
  %v241 = vpack.c.b16 %v225, %v225
  %v242 = vpack.c.b16 %v226, %v226
  %v243 = vpack.c.b16 %v227, %v227
  %v244 = vpack.c.b16 %v228, %v228
  %v245 = vpack.c.b16 %v229, %v229
  %v246 = vpack.c.b16 %v230, %v230
  %v247 = vpack.c.b16 %v231, %v231
  %v248 = vpack.c.b16 %v232, %v232
  %v249 = vpack.c.b16 %v233, %v233
  %v250 = vpack.c.b16 %v234, %v234
  %v251 = vpack.c.b16 %v235, %v235
  %v252 = vpack.c.b16 %v236, %v236
  %v253 = vpack.c.b16 %v237, %v237
  %vm270 = vcmask 519168
  %271 = vst.msk [vmem:[%s2] sm:$0xf] %vm270, %v238
  %272 = vst.msk [vmem:[%s2 + $0x4] sm:$0xf] %vm270, %v239
  %273 = vst.msk [vmem:[%s2 + $0x8] sm:$0xf] %vm270, %v240
  %274 = vst.msk [vmem:[%s2 + $0xc] sm:$0xf] %vm270, %v241
  %275 = vst.msk [vmem:[%s2 + $0x10] sm:$0xf] %vm270, %v242
  %276 = vst.msk [vmem:[%s2 + $0x14] sm:$0xf] %vm270, %v243
  %277 = vst.msk [vmem:[%s2 + $0x18] sm:$0xf] %vm270, %v244
  %278 = vst.msk [vmem:[%s2 + $0x1c] sm:$0xf] %vm270, %v245
  %279 = vst.msk [vmem:[%s2 + $0x20] sm:$0xf] %vm270, %v246
  %280 = vst.msk [vmem:[%s2 + $0x24] sm:$0xf] %vm270, %v247
  %281 = vst.msk [vmem:[%s2 + $0x28] sm:$0xf] %vm270, %v248
  %282 = vst.msk [vmem:[%s2 + $0x2c] sm:$0xf] %vm270, %v249
  %283 = vst.msk [vmem:[%s2 + $0x30] sm:$0xf] %vm270, %v250
  %284 = vst.msk [vmem:[%s2 + $0x34] sm:$0xf] %vm270, %v251
  %285 = vst.msk [vmem:[%s2 + $0x38] sm:$0xf] %vm270, %v252
  %286 = vst.msk [vmem:[%s2 + $0x3c] sm:$0xf] %vm270, %v253
  // Predicated region
  $region10: #{tpu_custom_call.1} parent=0 // pred_check
    _
  $region11: #{tpu_custom_call.1} parent=0 // pred_check_branch
    %288 = sbr.rel (0) target = $region13
  $region12: #{tpu_custom_call.1} parent=0 // pred_region
    _
  $region13: #{tpu_custom_call.1} parent=0 // pred_fallthru
    _
  // Predicated region
  $region14: #{tpu_custom_call.1} parent=0 // pred_check
    _
  $region15: #{tpu_custom_call.1} parent=0 // pred_check_branch
    %290 = sbr.rel (0) target = $region17
  $region16: #{tpu_custom_call.1} parent=0 // pred_region
    _
  $region17: #{tpu_custom_call.1} parent=0 // pred_fallthru
    _

</llo_original>
